<compile_context>
chip_gen: v6e
topology: v6e:2x2x1
jax: 0.10.0
libtpu: 0.0.40
codegen_flags: <defaults>
</compile_context>

<pallas_src>
import functools

import jax
import jax.numpy as jnp
from jax.experimental import pallas as pl
from jax.experimental.pallas import tpu as pltpu


def _round_up(x, m):
    return (x + m - 1) // m * m


def _vmem_limits():
    """(vmem_limit_bytes for CompilerParams, tile-planning budget in bytes)."""
    phys = 64 << 20  # conservative default (v7x per-TensorCore VMEM)
    try:
        info = pltpu.get_tpu_info()
        phys = int(getattr(info, "vmem_capacity_bytes", phys))
    except Exception:
        pass
    limit = min(int(phys * 0.75), 96 << 20)
    budget = int(limit * 0.85)      # headroom for compiler-internal scratch
    return limit, budget


def _vmem_bytes(tm, tn, tk, has_mem, single_k):
    """Rough double-buffered VMEM footprint of one grid step."""
    b = 2 * tm * tk * 2            # x tile (bf16, double-buffered)
    b += 2 * tk * tn * 2           # weight tile (bf16, double-buffered)
    b += 2 * 8 * tn * 4            # bias tile (f32, sublane-padded)
    if has_mem:
        b += 2 * tm * tn * 4       # mem_in tile (f32)
    b += 2 * tm * tn * 2           # spike output tile (bf16)
    b += 2 * tm * tn * 4           # membrane output tile (f32)
    if not single_k:
        b += tm * tn * 4           # f32 accumulator scratch
    return b


def _plan_tiles(B, Fop, Fip, has_mem, budget, max_tk=None):
    """Pick (tm, tn, tk). tn divides Fop, tk divides Fip, tm multiple of 8."""
    tm = min(512, _round_up(B, 8))

    tn = 512
    while tn > 128 and Fop % tn != 0:
        tn //= 2

    # v7x megacore: if batch fits in one tile, make sure the j axis has >= 2
    # blocks so the second TensorCore is not idle (no-op on v5e/v6e).
    if _round_up(B, tm) == tm and Fop == tn and tn >= 256:
        tn //= 2

    def tk_candidates():
        if max_tk is None or Fip <= max_tk:
            yield Fip                               # single K block preferred
        for d in (4096, 2048, 1024, 512, 256, 128):
            if d < Fip and Fip % d == 0 and (max_tk is None or d <= max_tk):
                yield d

    while True:
        for tk in tk_candidates():
            if _vmem_bytes(tm, tn, tk, has_mem, tk == Fip) <= budget:
                return tm, tn, tk
        if tn > 128:
            tn //= 2
        elif tm > 8:
            tm = max(8, tm // 2)
        else:
            return tm, tn, 128      # last resort (practically unreachable)


def prepare_params(weight, bias):
    """One-time parameter prep (amortized across all forward calls).

    weight: [F_out, F_in] (PyTorch nn.Linear layout), bias: [F_out].
    Returns padded, transposed bf16 weight [Fip, Fop] and f32 bias [1, Fop].
    """
    F_out, F_in = weight.shape
    Fip = _round_up(F_in, 128)
    Fop = _round_up(F_out, 128)
    w = jnp.pad(weight.T, ((0, Fip - F_in), (0, Fop - F_out))).astype(jnp.bfloat16)
    b = jnp.pad(bias, (0, Fop - F_out)).reshape(1, Fop).astype(jnp.float32)
    return {"w": w, "b": b, "F_in": F_in, "F_out": F_out}


def _make_kernel(beta, v_th, has_mem, single_k):
    def _finalize(z, m0, spk_ref, mem_ref):
        mem = beta * m0 + z if has_mem else z          # LIF integrate (f32)
        spikes = (mem >= v_th).astype(jnp.float32)
        spk_ref[...] = spikes.astype(spk_ref.dtype)    # {0,1} -> bf16 lossless
        mem_ref[...] = (mem - spikes * v_th).astype(mem_ref.dtype)  # soft reset

    if single_k:
        def kernel(*refs):
            if has_mem:
                x_ref, w_ref, b_ref, m0_ref, spk_ref, mem_ref = refs
                m0 = m0_ref[...]
            else:
                x_ref, w_ref, b_ref, spk_ref, mem_ref = refs
                m0 = None
            z = jnp.dot(x_ref[...], w_ref[...],
                        preferred_element_type=jnp.float32) + b_ref[...]
            _finalize(z, m0, spk_ref, mem_ref)
        return kernel

    def kernel(*refs):
        if has_mem:
            x_ref, w_ref, b_ref, m0_ref, spk_ref, mem_ref, acc_ref = refs
        else:
            x_ref, w_ref, b_ref, spk_ref, mem_ref, acc_ref = refs
        k = pl.program_id(2)

        @pl.when(k == 0)
        def _():
            acc_ref[...] = jnp.zeros_like(acc_ref)

        acc_ref[...] += jnp.dot(x_ref[...], w_ref[...],
                                preferred_element_type=jnp.float32)

        @pl.when(k == pl.num_programs(2) - 1)
        def _():
            m0 = m0_ref[...] if has_mem else None
            _finalize(acc_ref[...] + b_ref[...], m0, spk_ref, mem_ref)
    return kernel


def spiking_linear(x, params, mem_in=None, *, beta=0.9, v_th=1.0, _max_tk=None):
    """x: [B, F_in] f32. params: output of prepare_params().
    mem_in: optional [B, F_out] membrane state (None = fresh step).
    Returns (spikes [B, F_out] f32, mem [B, F_out] f32)."""
    w, b = params["w"], params["b"]
    F_in, F_out = params["F_in"], params["F_out"]
    B, F_in_x = x.shape
    assert F_in_x == F_in, "x feature dim must match weight in_features"
    Fip, Fop = w.shape
    has_mem = mem_in is not None

    vmem_limit, budget = _vmem_limits()
    tm, tn, tk = _plan_tiles(B, Fop, Fip, has_mem, budget, max_tk=_max_tk)
    single_k = (tk == Fip)
    Bp = _round_up(B, tm)

    # Per-call work touches only x (and mem_in); weight/bias were prepped once.
    xp = jnp.pad(x, ((0, Bp - B), (0, Fip - F_in))).astype(jnp.bfloat16)
    inputs = [xp, w, b]

    if single_k:
        grid = (Bp // tm, Fop // tn)
        in_specs = [
            pl.BlockSpec((tm, tk), lambda i, j: (i, 0)),   # x
            pl.BlockSpec((tk, tn), lambda i, j: (0, j)),   # weight [F_in, F_out]
            pl.BlockSpec((1, tn), lambda i, j: (0, j)),    # bias
        ]
        out_spec = pl.BlockSpec((tm, tn), lambda i, j: (i, j))
        if has_mem:
            in_specs.append(pl.BlockSpec((tm, tn), lambda i, j: (i, j)))
        scratch = []
        semantics = ("parallel", "parallel")
    else:
        grid = (Bp // tm, Fop // tn, Fip // tk)
        in_specs = [
            pl.BlockSpec((tm, tk), lambda i, j, k: (i, k)),   # x
            pl.BlockSpec((tk, tn), lambda i, j, k: (k, j)),   # weight
            pl.BlockSpec((1, tn), lambda i, j, k: (0, j)),    # bias
        ]
        out_spec = pl.BlockSpec((tm, tn), lambda i, j, k: (i, j))
        if has_mem:
            in_specs.append(pl.BlockSpec((tm, tn), lambda i, j, k: (i, j)))
        scratch = [pltpu.VMEM((tm, tn), jnp.float32)]
        semantics = ("parallel", "parallel", "arbitrary")

    if has_mem:
        mp = jnp.pad(mem_in.astype(jnp.float32),
                     ((0, Bp - B), (0, Fop - F_out)))
        inputs.append(mp)

    kernel = _make_kernel(beta, v_th, has_mem, single_k)

    spk, mem = pl.pallas_call(
        kernel,
        out_shape=(
            jax.ShapeDtypeStruct((Bp, Fop), jnp.bfloat16),   # spikes ({0,1})
            jax.ShapeDtypeStruct((Bp, Fop), jnp.float32),    # membrane
        ),
        grid_spec=pltpu.PrefetchScalarGridSpec(
            num_scalar_prefetch=0,
            grid=grid,
            in_specs=in_specs,
            out_specs=(out_spec, out_spec),
            scratch_shapes=scratch,
        ),
        compiler_params=pltpu.CompilerParams(
            dimension_semantics=semantics,
            vmem_limit_bytes=vmem_limit,
        ),
    )(*inputs)

    return spk[:B, :F_out].astype(jnp.float32), mem[:B, :F_out]


if __name__ == "__main__":
    key = jax.random.PRNGKey(0)
    kx, kw, kb = jax.random.split(key, 3)

    # Small but non-aligned shapes to exercise padding and multi-tile grids.
    B, F_in, F_out = 8, 200, 130
    beta, v_th = 0.9, 1.0

    x = jax.random.normal(kx, (B, F_in), dtype=jnp.float32)
    # nn.Linear-style init U(-1/sqrt(F_in), 1/sqrt(F_in)).
    bound = 1.0 / (F_in ** 0.5)
    weight = jax.random.uniform(kw, (F_out, F_in), jnp.float32, -bound, bound)
    bias = jax.random.uniform(kb, (F_out,), jnp.float32, -bound, bound)

    params = prepare_params(weight, bias)   # one-time prep (hoisted)

    # Single-K (no reduction grid axis) path: fresh step + carried membrane.
    spk1, mem1 = spiking_linear(x, params, beta=beta, v_th=v_th)
    spk2, mem2 = spiking_linear(x, params, mem_in=mem1, beta=beta, v_th=v_th)
    # Force the multi-K (accumulator) path too, with and without membrane.
    spk3, mem3 = spiking_linear(x, params, beta=beta, v_th=v_th, _max_tk=128)
    spk4, mem4 = spiking_linear(x, params, mem_in=mem1, beta=beta, v_th=v_th,
                                _max_tk=128)
    jax.block_until_ready((spk1, mem1, spk2, mem2, spk3, mem3, spk4, mem4))

    # Pure-JAX reference along the same bf16-input / f32-accumulate path.
    z = jnp.dot(x.astype(jnp.bfloat16), weight.astype(jnp.bfloat16).T,
                preferred_element_type=jnp.float32) + bias

    def ref_step(mem0):
        mem = beta * mem0 + z
        s = (mem >= v_th).astype(jnp.float32)
        return s, mem - s * v_th

    rs1, rm1 = ref_step(jnp.zeros((B, F_out), jnp.float32))
    rs2, rm2 = ref_step(rm1)

    def check(spk, mem, rs, rm, pre_reset_mem):
        # Ignore values sitting essentially on the threshold (accumulation-
        # order noise between the tiled kernel and the XLA reference).
        far = jnp.abs(pre_reset_mem - v_th) >= 1e-3
        assert bool(jnp.all(jnp.where(far, spk == rs, True))), "spike mismatch"
        assert bool(jnp.all(jnp.where(far, jnp.abs(mem - rm) < 1e-3, True))), \
            "membrane mismatch"

    check(spk1, mem1, rs1, rm1, z)
    check(spk2, mem2, rs2, rm2, beta * rm1 + z)
    check(spk3, mem3, rs1, rm1, z)
    check(spk4, mem4, rs2, rm2, beta * rm1 + z)

    print("KERNEL_OK")
</pallas_src>

<mosaic_0001>
module attributes {stable_mosaic.version = 11 : i64} {
  func.func @kernel(%arg0: i32, %arg1: i32, %arg2: memref<8x256xbf16, #tpu.memory_space<vmem>>, %arg3: memref<256x128xbf16, #tpu.memory_space<vmem>>, %arg4: memref<1x128xf32, #tpu.memory_space<vmem>>, %arg5: memref<8x128xbf16, #tpu.memory_space<vmem>>, %arg6: memref<8x128xf32, #tpu.memory_space<vmem>>) attributes {dimension_semantics = [#tpu.dimension_semantics<parallel>, #tpu.dimension_semantics<parallel>], iteration_bounds = array<i64: 1, 2>, scalar_prefetch = 0 : i64, scratch_operands = 0 : i64, tpu.core_type = #tpu.core_type<tc>, window_params = [{transform_indices = @transform_0, window_bounds = array<i64: 8, 256>}, {transform_indices = @transform_1, window_bounds = array<i64: 256, 128>}, {transform_indices = @transform_2, window_bounds = array<i64: 1, 128>}, {transform_indices = @transform_3, window_bounds = array<i64: 8, 128>}, {transform_indices = @transform_4, window_bounds = array<i64: 8, 128>}]} {
    %c0 = arith.constant 0 : index
    %c0_0 = arith.constant 0 : index
    %0 = vector.load %arg2[%c0, %c0_0] : memref<8x256xbf16, #tpu.memory_space<vmem>>, vector<8x256xbf16>
    %c0_1 = arith.constant 0 : index
    %c0_2 = arith.constant 0 : index
    %1 = vector.load %arg3[%c0_1, %c0_2] : memref<256x128xbf16, #tpu.memory_space<vmem>>, vector<256x128xbf16>
    %cst = arith.constant dense<0.000000e+00> : vector<8x128xf32>
    %2 = tpu.matmul %0, %1, %cst {dimension_numbers = #tpu.dot_dimension_numbers<[1], [0], [0], [1], [0, 0, 1, 1], [], []>} : vector<8x256xbf16>, vector<256x128xbf16>, vector<8x128xf32> -> vector<8x128xf32>
    %c0_3 = arith.constant 0 : index
    %c0_4 = arith.constant 0 : index
    %3 = vector.load %arg4[%c0_3, %c0_4] : memref<1x128xf32, #tpu.memory_space<vmem>>, vector<1x128xf32>
    %4 = vector.broadcast %3 : vector<1x128xf32> to vector<8x128xf32>
    %5 = arith.addf %2, %4 : vector<8x128xf32>
    %cst_5 = arith.constant 1.000000e+00 : f32
    %6 = vector.broadcast %cst_5 : f32 to vector<8x128xf32>
    %7 = arith.cmpf oge, %5, %6 : vector<8x128xf32>
    %8 = arith.extui %7 : vector<8x128xi1> to vector<8x128xi32>
    %9 = arith.sitofp %8 : vector<8x128xi32> to vector<8x128xf32>
    %10 = arith.truncf %9 : vector<8x128xf32> to vector<8x128xbf16>
    %c0_6 = arith.constant 0 : index
    %c0_7 = arith.constant 0 : index
    %11 = vector.load %arg5[%c0_6, %c0_7] : memref<8x128xbf16, #tpu.memory_space<vmem>>, vector<8x128xbf16>
    tpu.vector_store %arg5[%c0_6, %c0_7], %10 {strides = array<i32>} : memref<8x128xbf16, #tpu.memory_space<vmem>>, vector<8x128xbf16>,
    %cst_8 = arith.constant 1.000000e+00 : f32
    %12 = vector.broadcast %cst_8 : f32 to vector<8x128xf32>
    %13 = arith.mulf %9, %12 : vector<8x128xf32>
    %14 = arith.subf %5, %13 : vector<8x128xf32>
    %c0_9 = arith.constant 0 : index
    %c0_10 = arith.constant 0 : index
    %15 = vector.load %arg6[%c0_9, %c0_10] : memref<8x128xf32, #tpu.memory_space<vmem>>, vector<8x128xf32>
    tpu.vector_store %arg6[%c0_9, %c0_10], %14 {strides = array<i32>} : memref<8x128xf32, #tpu.memory_space<vmem>>, vector<8x128xf32>,
    return
  }
  func.func @transform_0(%arg0: i32, %arg1: i32) -> (i32, i32) {
    %c0_i32 = arith.constant 0 : i32
    %c0_i32_0 = arith.constant 0 : i32
    return %arg0, %c0_i32 : i32, i32
  }
  func.func @transform_1(%arg0: i32, %arg1: i32) -> (i32, i32) {
    %c0_i32 = arith.constant 0 : i32
    %c0_i32_0 = arith.constant 0 : i32
    return %c0_i32, %arg1 : i32, i32
  }
  func.func @transform_2(%arg0: i32, %arg1: i32) -> (i32, i32) {
    %c0_i32 = arith.constant 0 : i32
    %c0_i32_0 = arith.constant 0 : i32
    return %c0_i32, %arg1 : i32, i32
  }
  func.func @transform_3(%arg0: i32, %arg1: i32) -> (i32, i32) {
    %c0_i32 = arith.constant 0 : i32
    return %arg0, %arg1 : i32, i32
  }
  func.func @transform_4(%arg0: i32, %arg1: i32) -> (i32, i32) {
    %c0_i32 = arith.constant 0 : i32
    return %arg0, %arg1 : i32, i32
  }
}

</mosaic_0001>

<llo_original>
// kernel: tpu_custom_call.1
$region0: #{tpu_custom_call.1}
  #allocation0 [shape = 'u32[]', space=smem, size = 0x4, offset = 0x4, fixed_abs, tag = 'smem constant byte address 0x4 - core index']
  #allocation1 [shape = 'u32[144,128]{1,0:T(1,128)}', space=vmem, size = 0x12000, scoped, tag = 'internal scratch']
  %s0 = inlined_call_operand.hbm [shape: bf16[8,256], index: 0, kind: input, shape index: {}]
  %s1 = inlined_call_operand.hbm [shape: bf16[256,256], index: 1, kind: input, shape index: {}]
  %s2 = inlined_call_operand.vmem [shape: f32[1,256], index: 2, kind: input, shape index: {}]
  %s3 = inlined_call_operand.hbm [shape: bf16[8,256], index: 3, kind: output, shape index: {0}]
  %s4 = inlined_call_operand.hbm [shape: f32[8,256], index: 4, kind: output, shape index: {1}]
  %5 = xla_tuple %s3, %s4
  %s6 = sld [smem:[#allocation0]]
  $region61: #{tpu_custom_call.1} parent=0
    _
  %s8 = ssub.s32 1, %s6
  %s9 = scalar_select 0, %s8, %s6
  $region1: #{tpu_custom_call.1} parent=0
    #allocation2 [shape = 'u8[4096]{0}', space=vmem, size = 0x1000, scoped, tag = 'input window, operand 0, single buffered']
    #allocation3 [shape = 's32[2]{0}', space=sflag, size = 0x8, scoped, tag = 'scoped memory for tpu_custom_call.1']
    #allocation4 [shape = 's32[2]{0}', space=sflag, size = 0x8, scoped, tag = 'scoped memory for tpu_custom_call.1']
    #allocation5 [shape = 'u8[131072]{0}', space=vmem, size = 0x20000, scoped, tag = 'input window, operand 1']
    #allocation6 [shape = 's32[2]{0}', space=sflag, size = 0x8, scoped, tag = 'scoped memory for tpu_custom_call.1']
    #allocation7 [shape = 'u8[4096]{0}', space=vmem, size = 0x1000, scoped, tag = 'output window, operand 0']
    #allocation8 [shape = 'u8[8192]{0}', space=vmem, size = 0x2000, scoped, tag = 'output window, operand 1']
    #allocation9 [shape = 's32[2]{0}', space=sflag, size = 0x8, scoped, tag = 'scoped memory for tpu_custom_call.1']
    %10 = vsyncpa [#allocation3], 0
    %11 = vsyncpa [#allocation6], 0
    %s12 = scalar_lea.sflag [#allocation6], 1
    %13 = vsyncpa %s12, 0
    %14 = vsyncpa [#allocation4], 0
    %s15 = scalar_lea.sflag [#allocation4], 1
    %16 = vsyncpa %s15, 0
    %17 = vsyncpa [#allocation9], 0
    %s18 = scalar_lea.sflag [#allocation9], 1
    %19 = vsyncpa %s18, 0
    loop: start=0, step=1, limit=4
    $region2: #{tpu_custom_call.1} parent=1 // loop_pre_header
      _
    $region3: #{tpu_custom_call.1} parent=1 // loop_header
      %s21 = sphi 0, %s25
      %p22 = scmp.ge.s32.totalorder %s21, 4
      %s28 = sphi 0, %s40
      %s29 = sphi 0, %s36
      %s30 = sphi 0, %s28
      %s31 = sphi 0, %s29
      %s32 = sphi 0, %s30
      %s33 = sphi 0, %s31
      %s43 = sphi 0, %s45
      %s46 = sphi 0, %s43
      %s47 = sphi 0, %s46
      %s63 = sphi 0, %s47
      %s69 = sphi 0, %s71
      %s72 = sphi 0, %s69
      %s73 = sphi 0, %s72
      %s89 = sphi 0, %s73
      %s95 = sphi 0, %s97
      %s98 = sphi 0, %s95
      %s99 = sphi 0, %s98
      %s115 = sphi 0, %s99
      %s123 = sphi 0, %s125
      %s126 = sphi 0, %s123
      %s127 = sphi 0, %s126
      %s143 = sphi 0, %s127
      %s151 = sphi 0, %s153
      %s154 = sphi 0, %s151
      %s155 = sphi 0, %s154
      %s171 = sphi 0, %s155
    $region4: #{tpu_custom_call.1} parent=1 // loop_header_branch
      %24 = sbr.rel (%p22) target = $region8
    $region5: #{tpu_custom_call.1} parent=1 // loop_body
      %s26 = ssub.s32 %s21, 1
      %s27 = ssub.s32 %s21, 2
      %s34 = sadd.s32 1, %s29
      %p35 = scmp.ge.s32.totalorder %s34, 2
      %s36 = scalar_select %p35, 0, %s34
      %s37 = sadd.s32 1, %s28
      %s38 = scalar_select %p35, %s37, %s28
      %p39 = scmp.ge.s32.totalorder %s38, 1
      %s40 = scalar_select %p39, 0, %s38
      %s41 = ssub.s32 %s28, %s40
      %p42 = scmp.eq.s32.totalorder %s41, 0
      %s44 = sadd.s32 %s43, 1
      %s45 = scalar_select %p42, %s43, %s44
      %p48 = pneg %p42
      %p49 = scmp.eq.s32.totalorder %s21, 1
      %p50 = por %p48, %p49
      %p51 = scmp.ne.s32.totalorder %s43, %s46
      %p52 = scmp.eq.s32.totalorder %s21, 0
      %p53 = por %p51, %p52
      %p54 = scmp.ne.s32.totalorder %s43, %s46
      %p55 = scmp.eq.s32.totalorder %s26, 1
      %p56 = por %p54, %p55
      %p57 = scmp.ne.s32.totalorder %s46, %s47
      %p58 = scmp.eq.s32.totalorder %s26, 0
      %p59 = por %p57, %p58
      %p60 = scmp.ne.s32.totalorder %s46, %s47
      %p61 = scmp.eq.s32.totalorder %s27, 1
      %p62 = por %p60, %p61
      %p64 = scmp.ne.s32.totalorder %s47, %s63
      %p65 = scmp.eq.s32.totalorder %s27, 0
      %p66 = por %p64, %p65
      %s67 = ssub.s32 %s29, %s36
      %p68 = scmp.eq.s32.totalorder %s67, 0
      %s70 = sadd.s32 %s69, 1
      %s71 = scalar_select %p68, %s69, %s70
      %p74 = pneg %p68
      %p75 = scmp.eq.s32.totalorder %s21, 1
      %p76 = por %p74, %p75
      %p77 = scmp.ne.s32.totalorder %s69, %s72
      %p78 = scmp.eq.s32.totalorder %s21, 0
      %p79 = por %p77, %p78
      %p80 = scmp.ne.s32.totalorder %s69, %s72
      %p81 = scmp.eq.s32.totalorder %s26, 1
      %p82 = por %p80, %p81
      %p83 = scmp.ne.s32.totalorder %s72, %s73
      %p84 = scmp.eq.s32.totalorder %s26, 0
      %p85 = por %p83, %p84
      %p86 = scmp.ne.s32.totalorder %s72, %s73
      %p87 = scmp.eq.s32.totalorder %s27, 1
      %p88 = por %p86, %p87
      %p90 = scmp.ne.s32.totalorder %s73, %s89
      %p91 = scmp.eq.s32.totalorder %s27, 0
      %p92 = por %p90, %p91
      %s93 = ssub.s32 %s29, %s36
      %p94 = scmp.eq.s32.totalorder %s93, 0
      %s96 = sadd.s32 %s95, 1
      %s97 = scalar_select %p94, %s95, %s96
      %p100 = pneg %p94
      %p101 = scmp.eq.s32.totalorder %s21, 1
      %p102 = por %p100, %p101
      %p103 = scmp.ne.s32.totalorder %s95, %s98
      %p104 = scmp.eq.s32.totalorder %s21, 0
      %p105 = por %p103, %p104
      %p106 = scmp.ne.s32.totalorder %s95, %s98
      %p107 = scmp.eq.s32.totalorder %s26, 1
      %p108 = por %p106, %p107
      %p109 = scmp.ne.s32.totalorder %s98, %s99
      %p110 = scmp.eq.s32.totalorder %s26, 0
      %p111 = por %p109, %p110
      %p112 = scmp.ne.s32.totalorder %s98, %s99
      %p113 = scmp.eq.s32.totalorder %s27, 1
      %p114 = por %p112, %p113
      %p116 = scmp.ne.s32.totalorder %s99, %s115
      %p117 = scmp.eq.s32.totalorder %s27, 0
      %p118 = por %p116, %p117
      %s119 = ssub.s32 %s28, %s40
      %s120 = ssub.s32 %s29, %s36
      %s121 = sor.u32 %s119, %s120
      %p122 = scmp.eq.s32.totalorder %s121, 0
      %s124 = sadd.s32 %s123, 1
      %s125 = scalar_select %p122, %s123, %s124
      %p128 = pneg %p122
      %p129 = scmp.eq.s32.totalorder %s21, 1
      %p130 = por %p128, %p129
      %p131 = scmp.ne.s32.totalorder %s123, %s126
      %p132 = scmp.eq.s32.totalorder %s21, 0
      %p133 = por %p131, %p132
      %p134 = scmp.ne.s32.totalorder %s123, %s126
      %p135 = scmp.eq.s32.totalorder %s26, 1
      %p136 = por %p134, %p135
      %p137 = scmp.ne.s32.totalorder %s126, %s127
      %p138 = scmp.eq.s32.totalorder %s26, 0
      %p139 = por %p137, %p138
      %p140 = scmp.ne.s32.totalorder %s126, %s127
      %p141 = scmp.eq.s32.totalorder %s27, 1
      %p142 = por %p140, %p141
      %p144 = scmp.ne.s32.totalorder %s127, %s143
      %p145 = scmp.eq.s32.totalorder %s27, 0
      %p146 = por %p144, %p145
      %s147 = ssub.s32 %s28, %s40
      %s148 = ssub.s32 %s29, %s36
      %s149 = sor.u32 %s147, %s148
      %p150 = scmp.eq.s32.totalorder %s149, 0
      %s152 = sadd.s32 %s151, 1
      %s153 = scalar_select %p150, %s151, %s152
      %p156 = pneg %p150
      %p157 = scmp.eq.s32.totalorder %s21, 1
      %p158 = por %p156, %p157
      %p159 = scmp.ne.s32.totalorder %s151, %s154
      %p160 = scmp.eq.s32.totalorder %s21, 0
      %p161 = por %p159, %p160
      %p162 = scmp.ne.s32.totalorder %s151, %s154
      %p163 = scmp.eq.s32.totalorder %s26, 1
      %p164 = por %p162, %p163
      %p165 = scmp.ne.s32.totalorder %s154, %s155
      %p166 = scmp.eq.s32.totalorder %s26, 0
      %p167 = por %p165, %p166
      %p168 = scmp.ne.s32.totalorder %s154, %s155
      %p169 = scmp.eq.s32.totalorder %s27, 1
      %p170 = por %p168, %p169
      %p172 = scmp.ne.s32.totalorder %s155, %s171
      %p173 = scmp.eq.s32.totalorder %s27, 0
      %p174 = por %p172, %p173
      %p175 = scmp.le.s32.totalorder 1, %s21
      %p176 = scmp.lt.s32.totalorder %s21, 3
      %p177 = pnand %p175, %p176
      %p178 = pneg %p177
      // Predicated region
      $region9: #{tpu_custom_call.1} parent=5 // pred_check
        _
      $region10: #{tpu_custom_call.1} parent=5 // pred_check_branch
        %180 = sbr.rel (%p177) target = $region12
      $region11: #{tpu_custom_call.1} parent=5 // pred_region
        %s181 = ssub.s32 %s21, 1
        // Predicated region
        $region13: #{tpu_custom_call.1} parent=11 // pred_check
          %p182 = pneg %p59
        $region14: #{tpu_custom_call.1} parent=11 // pred_check_branch
          %184 = sbr.rel (%p182) target = $region16
        $region15: #{tpu_custom_call.1} parent=11 // pred_region
          %s186 = ssub.s32 128, 128
          %187 = vsyncadd [#allocation3], %s186
          %s188 = smul.addr %s30, 2
          %s189 = smul.addr %s188, 64
          %s190 = scalar_lea.hbm %s0, %s189
          %s192 = sshll.u32 [#allocation2], 4
          %s193 = int_to_ptr.vmem [resolvable:$true] %s192
          %195 = dma.hbm_to_vmem [thread:$0]  %s190, 128, %s193, [#allocation3]
        $region16: #{tpu_custom_call.1} parent=11 // pred_fallthru
          _
      $region12: #{tpu_custom_call.1} parent=5 // pred_fallthru
        _
      %p196 = scmp.lt.s32.totalorder %s21, 2
      // Predicated region
      $region17: #{tpu_custom_call.1} parent=5 // pred_check
        %p197 = pneg %p196
      $region18: #{tpu_custom_call.1} parent=5 // pred_check_branch
        %199 = sbr.rel (%p197) target = $region20
      $region19: #{tpu_custom_call.1} parent=5 // pred_region
        // Predicated region
        $region21: #{tpu_custom_call.1} parent=19 // pred_check
          %p200 = pneg %p79
        $region22: #{tpu_custom_call.1} parent=19 // pred_check_branch
          %202 = sbr.rel (%p200) target = $region24
        $region23: #{tpu_custom_call.1} parent=19 // pred_region
          %s203 = sand.u32 %s69, 1
          %s204 = scalar_lea.sflag [#allocation6], %s203
          %s205 = sand.u32 %s69, 1
          %s206 = smul.addr %s205, 128
          %s207 = scalar_lea.vmem [#allocation5], %s206
          %s209 = ssub.s32 2048, 2048
          %210 = vsyncadd %s204, %s209
          %s211 = smul.addr %s29, 64
          %s212 = scalar_lea.hbm %s1, %s211
          %s213 = sshll.u32 %s207, 4
          %s214 = int_to_ptr.vmem [resolvable:$true] %s213
          %219 = dma.hbm_to_vmem [thread:$0]  %s212, 2048, %s214, %s204, 128, 64, 4
        $region24: #{tpu_custom_call.1} parent=19 // pred_fallthru
          _
        // Predicated region
        $region25: #{tpu_custom_call.1} parent=19 // pred_check
          %p220 = pneg %p105
        $region26: #{tpu_custom_call.1} parent=19 // pred_check_branch
          %222 = sbr.rel (%p220) target = $region28
        $region27: #{tpu_custom_call.1} parent=19 // pred_region
          %p223 = scmp.lt.s32.totalorder %s29, 1
          %s224 = scalar_select %p223, %s29, 1
          %s225 = scalar_lea.vmem %s2, %s224
        $region28: #{tpu_custom_call.1} parent=19 // pred_fallthru
          _
      $region20: #{tpu_custom_call.1} parent=5 // pred_fallthru
        _
      %p226 = scmp.le.s32.totalorder 1, %s21
      %p227 = scmp.lt.s32.totalorder %s21, 3
      %p228 = pnand %p226, %p227
      %p229 = pneg %p228
      // Predicated region
      $region29: #{tpu_custom_call.1} parent=5 // pred_check
        _
      $region30: #{tpu_custom_call.1} parent=5 // pred_check_branch
        %231 = sbr.rel (%p228) target = $region32
      $region31: #{tpu_custom_call.1} parent=5 // pred_region
        %s232 = ssub.s32 %s21, 1
        // Predicated region
        $region33: #{tpu_custom_call.1} parent=31 // pred_check
          %p233 = pneg %p59
        $region34: #{tpu_custom_call.1} parent=31 // pred_check_branch
          %235 = sbr.rel (%p233) target = $region36
        $region35: #{tpu_custom_call.1} parent=31 // pred_region
          %236 = dma.done [#allocation3], 128
        $region36: #{tpu_custom_call.1} parent=31 // pred_fallthru
          _
        %s237 = sand.u32 %s72, 1
        %s238 = scalar_lea.sflag [#allocation6], %s237
        %s239 = sand.u32 %s72, 1
        %s240 = smul.addr %s239, 128
        %s241 = scalar_lea.vmem [#allocation5], %s240
        // Predicated region
        $region37: #{tpu_custom_call.1} parent=31 // pred_check
          %p242 = pneg %p85
        $region38: #{tpu_custom_call.1} parent=31 // pred_check_branch
          %244 = sbr.rel (%p242) target = $region40
        $region39: #{tpu_custom_call.1} parent=31 // pred_region
          %245 = dma.done %s238, 2048
        $region40: #{tpu_custom_call.1} parent=31 // pred_fallthru
          _
        %p246 = pneg %p59
        %p247 = pneg %p56
        %s248 = sand.u32 %s72, 1
        %s249 = scalar_lea.sflag [#allocation6], %s248
        %s250 = sand.u32 %s72, 1
        %s251 = smul.addr %s250, 128
        %s252 = scalar_lea.vmem [#allocation5], %s251
        %p253 = pneg %p85
        %p254 = pneg %p82
        %p255 = scmp.lt.s32.totalorder %s31, 1
        %s256 = scalar_select %p255, %s31, 1
        %s257 = scalar_lea.vmem %s2, %s256
        %p258 = pneg %p111
        %p259 = pneg %p108
        %p260 = pneg %p139
        %p261 = pneg %p136
        %s262 = sand.u32 %s126, 1
        %s263 = scalar_lea.sflag [#allocation4], %s262
        %s264 = sand.u32 %s126, 1
        %s265 = smul.addr %s264, 4
        %s266 = scalar_lea.vmem [#allocation7], %s265
        %p267 = pneg %p167
        %p268 = pneg %p164
        %s269 = sand.u32 %s154, 1
        %s270 = scalar_lea.sflag [#allocation9], %s269
        %s271 = sand.u32 %s154, 1
        %s272 = smul.addr %s271, 8
        %s273 = scalar_lea.vmem [#allocation8], %s272
        %p274 = scmp.lt.s32.totalorder %s31, 1
        %s275 = scalar_select %p274, %s31, 1
        %s276 = scalar_lea.vmem %s2, %s275
        %v278 = vld [vmem:[#allocation2] sm:$0xff]
        %v279 = vld [vmem:[%s241] sm:$0xf]
        %v280 = vld [vmem:[%s241 + $0x4] sm:$0xf]
        %v281 = vld [vmem:[%s241 + $0x8] sm:$0xf]
        %v282 = vld [vmem:[%s241 + $0xc] sm:$0xf]
        %v283 = vld [vmem:[%s241 + $0x10] sm:$0xf]
        %v284 = vld [vmem:[%s241 + $0x14] sm:$0xf]
        %v285 = vld [vmem:[%s241 + $0x18] sm:$0xf]
        %v286 = vld [vmem:[%s241 + $0x1c] sm:$0xf]
        %v287 = vld [vmem:[%s241 + $0x20] sm:$0xf]
        %v288 = vld [vmem:[%s241 + $0x24] sm:$0xf]
        %v289 = vld [vmem:[%s241 + $0x28] sm:$0xf]
        %v290 = vld [vmem:[%s241 + $0x2c] sm:$0xf]
        %v291 = vld [vmem:[%s241 + $0x30] sm:$0xf]
        %v292 = vld [vmem:[%s241 + $0x34] sm:$0xf]
        %v293 = vld [vmem:[%s241 + $0x38] sm:$0xf]
        %v294 = vld [vmem:[%s241 + $0x3c] sm:$0xf]
        %v295 = vld [vmem:[%s241 + $0x40] sm:$0xf]
        %v296 = vld [vmem:[%s241 + $0x44] sm:$0xf]
        %v297 = vld [vmem:[%s241 + $0x48] sm:$0xf]
        %v298 = vld [vmem:[%s241 + $0x4c] sm:$0xf]
        %v299 = vld [vmem:[%s241 + $0x50] sm:$0xf]
        %v300 = vld [vmem:[%s241 + $0x54] sm:$0xf]
        %v301 = vld [vmem:[%s241 + $0x58] sm:$0xf]
        %v302 = vld [vmem:[%s241 + $0x5c] sm:$0xf]
        %v303 = vld [vmem:[%s241 + $0x60] sm:$0xf]
        %v304 = vld [vmem:[%s241 + $0x64] sm:$0xf]
        %v305 = vld [vmem:[%s241 + $0x68] sm:$0xf]
        %v306 = vld [vmem:[%s241 + $0x6c] sm:$0xf]
        %v307 = vld [vmem:[%s241 + $0x70] sm:$0xf]
        %v308 = vld [vmem:[%s241 + $0x74] sm:$0xf]
        %v309 = vld [vmem:[%s241 + $0x78] sm:$0xf]
        %v310 = vld [vmem:[%s241 + $0x7c] sm:$0xf]
        %v311 = vld [vmem:[%s276] sm:$0x1]
        %v313 = vlaneseq
        %v314 = vshrl.u32 %v313, 7
        %v315 = vsub.s32 0, %v314
        %v316 = vrot.slane %v311, %v315
        %v319 = vunpack.c.l.b16 %v278
        %v320 = vunpack.c.h.b16 %v278
        %v321 = vpack.c.b16 %v319, %v319
        %v322 = vpack.c.b16 %v320, %v320
        %v357 = vunpack.c.l.b16 %v279
        %v358 = vunpack.c.l.b16 %v280
        %v359 = vunpack.c.l.b16 %v281
        %v360 = vunpack.c.l.b16 %v282
        %v361 = vunpack.c.l.b16 %v283
        %v362 = vunpack.c.l.b16 %v284
        %v363 = vunpack.c.l.b16 %v285
        %v364 = vunpack.c.l.b16 %v286
        %v365 = vunpack.c.l.b16 %v287
        %v366 = vunpack.c.l.b16 %v288
        %v367 = vunpack.c.l.b16 %v289
        %v368 = vunpack.c.l.b16 %v290
        %v369 = vunpack.c.l.b16 %v291
        %v370 = vunpack.c.l.b16 %v292
        %v371 = vunpack.c.l.b16 %v293
        %v372 = vunpack.c.l.b16 %v294
        %v373 = vunpack.c.l.b16 %v295
        %v374 = vunpack.c.l.b16 %v296
        %v375 = vunpack.c.l.b16 %v297
        %v376 = vunpack.c.l.b16 %v298
        %v377 = vunpack.c.l.b16 %v299
        %v378 = vunpack.c.l.b16 %v300
        %v379 = vunpack.c.l.b16 %v301
        %v380 = vunpack.c.l.b16 %v302
        %v381 = vunpack.c.l.b16 %v303
        %v382 = vunpack.c.l.b16 %v304
        %v383 = vunpack.c.l.b16 %v305
        %v384 = vunpack.c.l.b16 %v306
        %v385 = vunpack.c.l.b16 %v307
        %v386 = vunpack.c.l.b16 %v308
        %v387 = vunpack.c.l.b16 %v309
        %v388 = vunpack.c.l.b16 %v310
        %v389 = vpack.c.b16 %v358, %v357
        %v390 = vpack.c.b16 %v360, %v359
        %v391 = vpack.c.b16 %v362, %v361
        %v392 = vpack.c.b16 %v364, %v363
        %v393 = vpack.c.b16 %v366, %v365
        %v394 = vpack.c.b16 %v368, %v367
        %v395 = vpack.c.b16 %v370, %v369
        %v396 = vpack.c.b16 %v372, %v371
        %v397 = vpack.c.b16 %v374, %v373
        %v398 = vpack.c.b16 %v376, %v375
        %v399 = vpack.c.b16 %v378, %v377
        %v400 = vpack.c.b16 %v380, %v379
        %v401 = vpack.c.b16 %v382, %v381
        %v402 = vpack.c.b16 %v384, %v383
        %v403 = vpack.c.b16 %v386, %v385
        %v404 = vpack.c.b16 %v388, %v387
        %421 = vmatprep.subr.bf16.mxu0 0
        %422 = vmatpush1.bf16.msra.mxu0 %v396
        %423 = vmatprep.subr.bf16.mxu0 0
        %424 = vmatpush1.bf16.msra.mxu0 %v395
        %425 = vmatprep.subr.bf16.mxu0 0
        %426 = vmatpush1.bf16.msra.mxu0 %v394
        %427 = vmatprep.subr.bf16.mxu0 0
        %428 = vmatpush1.bf16.msra.mxu0 %v393
        %429 = vmatprep.subr.bf16.mxu0 0
        %430 = vmatpush1.bf16.msra.mxu0 %v392
        %431 = vmatprep.subr.bf16.mxu0 0
        %432 = vmatpush1.bf16.msra.mxu0 %v391
        %433 = vmatprep.subr.bf16.mxu0 0
        %434 = vmatpush1.bf16.msra.mxu0 %v390
        %435 = vmatprep.subr.bf16.mxu0 0
        %436 = vmatpush1.bf16.msra.mxu0 %v389
        %437 = vmatprep.subr.bf16.mxu0 0
        %438 = vmatpush2.bf16.msra.mxu0 %v404
        %439 = vmatprep.subr.bf16.mxu0 0
        %440 = vmatpush2.bf16.msra.mxu0 %v403
        %441 = vmatprep.subr.bf16.mxu0 0
        %442 = vmatpush2.bf16.msra.mxu0 %v402
        %443 = vmatprep.subr.bf16.mxu0 0
        %444 = vmatpush2.bf16.msra.mxu0 %v401
        %445 = vmatprep.subr.bf16.mxu0 0
        %446 = vmatpush2.bf16.msra.mxu0 %v400
        %447 = vmatprep.subr.bf16.mxu0 0
        %448 = vmatpush2.bf16.msra.mxu0 %v399
        %449 = vmatprep.subr.bf16.mxu0 0
        %450 = vmatpush2.bf16.msra.mxu0 %v398
        %451 = vmatprep.subr.bf16.mxu0 0
        %452 = vmatpush2.bf16.msra.mxu0 %v397
        %453 = vmatprep.mubr.bf16.mxu0 %v322
        %454 = vmatmul.mubr.bf16.gmra.mxu0 %v321
        %v455 = vpop.f32.mrf.mxu0
        %v456 = vadd.f32 %v316, %v455
        %v457 = vpop.f32.mrf.mxu0
        %v458 = vpop.f32.mrf.mxu0
        %v459 = vpop.f32.mrf.mxu0
        %460 = vdwg.mxu0
        %vm461 = vcmp.ge.f32.partialorder %v456, 1.0
        %v462 = vsel %vm461, 1, 0
        %v463 = vcvt.s32.f32 %v462
        %v464 = vpack.c.bf16 %v463, %v463
        %465 = vst [vmem:[%s266] sm:$0xf] %v464
        %v466 = vsub.f32 %v456, %v463
        %467 = vst [vmem:[%s273] sm:$0xff] %v466
        %s468 = sand.u32 %s126, 1
        %s469 = scalar_lea.sflag [#allocation4], %s468
        %s470 = sand.u32 %s126, 1
        %s471 = smul.addr %s470, 4
        %s472 = scalar_lea.vmem [#allocation7], %s471
        %s473 = sand.u32 %s154, 1
        %s474 = scalar_lea.sflag [#allocation9], %s473
        %s475 = sand.u32 %s154, 1
        %s476 = smul.addr %s475, 8
        %s477 = scalar_lea.vmem [#allocation8], %s476
        // Predicated region
        $region41: #{tpu_custom_call.1} parent=31 // pred_check
          %p478 = pneg %p136
        $region42: #{tpu_custom_call.1} parent=31 // pred_check_branch
          %480 = sbr.rel (%p478) target = $region44
        $region43: #{tpu_custom_call.1} parent=31 // pred_region
          %s482 = ssub.s32 64, 64
          %483 = vsyncadd %s469, %s482
          %s484 = smul.addr %s30, 2
          %s485 = sadd.s32 %s31, %s484
          %s486 = smul.addr %s485, 64
          %s487 = scalar_lea.hbm %s3, %s486
          %s489 = sshll.u32 %s472, 4
          %s490 = int_to_ptr.vmem [resolvable:$true] %s489
          %492 = dma.vmem_to_hbm [thread:$0]  %s490, 64, %s487, %s469
        $region44: #{tpu_custom_call.1} parent=31 // pred_fallthru
          _
        // Predicated region
        $region45: #{tpu_custom_call.1} parent=31 // pred_check
          %p493 = pneg %p164
        $region46: #{tpu_custom_call.1} parent=31 // pred_check_branch
          %495 = sbr.rel (%p493) target = $region48
        $region47: #{tpu_custom_call.1} parent=31 // pred_region
          %s497 = ssub.s32 128, 128
          %498 = vsyncadd %s474, %s497
          %s499 = smul.addr %s30, 2
          %s500 = sadd.s32 %s31, %s499
          %s501 = smul.addr %s500, 128
          %s502 = scalar_lea.hbm %s4, %s501
          %s504 = sshll.u32 %s477, 4
          %s505 = int_to_ptr.vmem [resolvable:$true] %s504
          %507 = dma.vmem_to_hbm [thread:$0]  %s505, 128, %s502, %s474
        $region48: #{tpu_custom_call.1} parent=31 // pred_fallthru
          _
      $region32: #{tpu_custom_call.1} parent=5 // pred_fallthru
        _
      %p508 = scmp.le.s32.totalorder 2, %s21
      // Predicated region
      $region49: #{tpu_custom_call.1} parent=5 // pred_check
        %p509 = pneg %p508
      $region50: #{tpu_custom_call.1} parent=5 // pred_check_branch
        %511 = sbr.rel (%p509) target = $region52
      $region51: #{tpu_custom_call.1} parent=5 // pred_region
        %s512 = ssub.s32 %s21, 2
        // Predicated region
        $region53: #{tpu_custom_call.1} parent=51 // pred_check
          %p513 = pneg %p142
        $region54: #{tpu_custom_call.1} parent=51 // pred_check_branch
          %515 = sbr.rel (%p513) target = $region56
        $region55: #{tpu_custom_call.1} parent=51 // pred_region
          %s516 = sand.u32 %s127, 1
          %s517 = scalar_lea.sflag [#allocation4], %s516
          %s518 = sand.u32 %s127, 1
          %s519 = smul.addr %s518, 4
          %s520 = scalar_lea.vmem [#allocation7], %s519
          %521 = dma.done %s517, 64
        $region56: #{tpu_custom_call.1} parent=51 // pred_fallthru
          _
        // Predicated region
        $region57: #{tpu_custom_call.1} parent=51 // pred_check
          %p522 = pneg %p170
        $region58: #{tpu_custom_call.1} parent=51 // pred_check_branch
          %524 = sbr.rel (%p522) target = $region60
        $region59: #{tpu_custom_call.1} parent=51 // pred_region
          %s525 = sand.u32 %s155, 1
          %s526 = scalar_lea.sflag [#allocation9], %s525
          %s527 = sand.u32 %s155, 1
          %s528 = smul.addr %s527, 8
          %s529 = scalar_lea.vmem [#allocation8], %s528
          %530 = dma.done %s526, 128
        $region60: #{tpu_custom_call.1} parent=51 // pred_fallthru
          _
      $region52: #{tpu_custom_call.1} parent=5 // pred_fallthru
        _
    $region6: #{tpu_custom_call.1} parent=1 // loop_footer
      %s25 = sadd.s32 1, %s21
    $region7: #{tpu_custom_call.1} parent=1 // loop_footer_branch
      %20 = sbr.rel target = $region3
    $region8: #{tpu_custom_call.1} parent=1 // loop_exit
      _
    %531 = vsyncpa [#allocation3], 1
    %s532 = scalar_lea.sflag [#allocation3], 1
    %533 = vsyncpa %s532, 1
    %534 = vsyncpa [#allocation6], 1
    %s535 = scalar_lea.sflag [#allocation6], 1
    %536 = vsyncpa %s535, 1
    %537 = vsyncpa [#allocation4], 1
    %s538 = scalar_lea.sflag [#allocation4], 1
    %539 = vsyncpa %s538, 1
    %540 = vsyncpa [#allocation9], 1
    %s541 = scalar_lea.sflag [#allocation9], 1
    %542 = vsyncpa %s541, 1

</llo_original>
